<compile_context>
chip_gen: v5e
topology: v5e:2x2
jax: 0.10.0
libtpu: 0.0.40
codegen_flags: <defaults>
</compile_context>

<pallas_src>
import jax
import jax.numpy as jnp
from jax.experimental import pallas as pl
from jax.experimental.pallas import tpu as pltpu


def _ppo_fwd_kernel(xT_ref, w1t_ref, b1_ref, w2t_ref, b2_ref, wht_ref, bh_ref,
                    out_ref):
    """Transposed orientation: batch on lanes (last dim), features on sublanes."""
    xT = xT_ref[...]                                                  # (D, tb)

    # Fused actor|critic trunk: one MXU pass per layer, f32 accumulation.
    h1 = jnp.tanh(jnp.dot(w1t_ref[...], xT,
                          preferred_element_type=jnp.float32) + b1_ref[...])   # (2H, tb)
    h2 = jnp.tanh(jnp.dot(w2t_ref[...], h1,
                          preferred_element_type=jnp.float32) + b2_ref[...])   # (2H, tb)

    # Fused heads: rows [0:A] are mean, row [A] is the value head.
    out = jnp.dot(wht_ref[...], h2,
                  preferred_element_type=jnp.float32) + bh_ref[...]            # (A+1, tb)

    # Single lane-dense output slab (batch = lane axis -> unmasked stores).
    out_ref[...] = out.astype(out_ref.dtype)


def _block_diag2(a, b):
    """block_diag of two 2-D arrays (built once in the wrapper)."""
    (m, n), (p, q) = a.shape, b.shape
    top = jnp.concatenate([a, jnp.zeros((m, q), a.dtype)], axis=1)
    bot = jnp.concatenate([jnp.zeros((p, n), b.dtype), b], axis=1)
    return jnp.concatenate([top, bot], axis=0)


def _pick_batch_tile(B, max_rows=2048):
    """Default batch tile.

    Whole batch as a single grid step when it is small (best for 1-TC
    v5e/v6e: per-step overhead dominates this tiny kernel); for large
    128-aligned batches, the largest 128-multiple divisor <= max_rows so
    v7x's two TensorCores get >= 2 parallel steps while tiles stay well
    inside every generation's scoped VMEM.
    """
    if B <= max_rows or B % 128 != 0:
        return B
    tb = (max_rows // 128) * 128
    while B % tb != 0:
        tb -= 128
    return tb


def ppo_net_forward(x, params, tb=None):
    """PPOnet forward. Returns (mean, action_std, v)."""
    B, D = x.shape
    H = params["wa1"].shape[1]
    A = params["wm"].shape[1]
    dtype = x.dtype

    if tb is None:
        tb = _pick_batch_tile(B)
    assert B % tb == 0, "batch tile must divide the batch"
    assert tb == B or tb % 128 == 0, \
        "partial batch tiles must be 128-aligned (batch sits on the lane axis)"
    grid = (B // tb,)

    # ---- one-time weight fusion (wrapper-side layout plumbing) ----
    w1 = jnp.concatenate([params["wa1"], params["wc1"]], axis=1)      # (D, 2H)
    b1 = jnp.concatenate([params["ba1"], params["bc1"]], axis=1)      # (1, 2H)
    w2 = _block_diag2(params["wa2"], params["wc2"])                   # (2H, 2H)
    b2 = jnp.concatenate([params["ba2"], params["bc2"]], axis=1)      # (1, 2H)
    wh = _block_diag2(params["wm"], params["wv"].T)                   # (2H, A+1) -> [mean | v]
    bh = jnp.concatenate([params["bm"], params["bv"]], axis=1)        # (1, A+1)

    # Transposed orientation: batch becomes the lane axis everywhere.
    operands = (x.T, w1.T, b1.T, w2.T, b2.T, wh.T, bh.T)

    def resident(arr):
        # Full-array block, same block index every step -> stays in VMEM.
        return pl.BlockSpec(arr.shape, lambda i: (0, 0))

    in_specs = [pl.BlockSpec((D, tb), lambda i: (0, i))] + \
               [resident(a) for a in operands[1:]]

    out_t = pl.pallas_call(
        _ppo_fwd_kernel,
        grid=grid,
        in_specs=in_specs,
        out_specs=pl.BlockSpec((A + 1, tb), lambda i: (0, i)),
        out_shape=jax.ShapeDtypeStruct((A + 1, B), dtype),
        compiler_params=pltpu.CompilerParams(
            # Only pays off on v7x's two TensorCores; measured neutral on v5e/v6e.
            dimension_semantics=("parallel",),
        ),
    )(*operands)

    mean = out_t[:A, :].T                                             # (B, A)
    v = out_t[A:, :].T                                                # (B, 1)

    # action_std = exp(AddBias(zeros)) has no batch dependence -> computed
    # once here instead of being written back (B, A) from the kernel.
    std = jnp.broadcast_to(jnp.exp(params["logstd"].reshape(1, A).astype(dtype)),
                           mean.shape)
    return mean, std, v


def init_params(key, inputsize, actionsize, hidden_size=64, dtype=jnp.float32):
    ks = jax.random.split(key, 12)

    def dense(kw, kb, fan_in, fan_out):
        w = jax.random.normal(kw, (fan_in, fan_out), dtype) / jnp.sqrt(jnp.float32(fan_in))
        b = jax.random.normal(kb, (1, fan_out), dtype) * 0.1
        return w.astype(dtype), b

    wa1, ba1 = dense(ks[0], ks[1], inputsize, hidden_size)
    wa2, ba2 = dense(ks[2], ks[3], hidden_size, hidden_size)
    wm, bm = dense(ks[4], ks[5], hidden_size, actionsize)
    wc1, bc1 = dense(ks[6], ks[7], inputsize, hidden_size)
    wc2, bc2 = dense(ks[8], ks[9], hidden_size, hidden_size)
    # Value head Linear(hidden, 1): weight kept as a (1, hidden) row.
    wv = (jax.random.normal(ks[10], (1, hidden_size), dtype)
          / jnp.sqrt(jnp.float32(hidden_size))).astype(dtype)
    bv = jnp.zeros((1, 1), dtype)
    # AddBias parameter, stored (actionsize, 1) like nn.Parameter(bias.unsqueeze(1)).
    # Module init is zeros; use small nonzero values so exp/broadcast are exercised.
    logstd = jax.random.normal(ks[11], (actionsize, 1), dtype) * 0.1
    return dict(wa1=wa1, ba1=ba1, wa2=wa2, ba2=ba2, wm=wm, bm=bm,
                wc1=wc1, bc1=bc1, wc2=wc2, bc2=bc2, wv=wv, bv=bv, logstd=logstd)


def _ref_forward(x, p):
    a1 = jnp.tanh(x @ p["wa1"] + p["ba1"])
    a2 = jnp.tanh(a1 @ p["wa2"] + p["ba2"])
    mean = a2 @ p["wm"] + p["bm"]
    c1 = jnp.tanh(x @ p["wc1"] + p["bc1"])
    c2 = jnp.tanh(c1 @ p["wc2"] + p["bc2"])
    v = c2 @ p["wv"].T + p["bv"]
    std = jnp.broadcast_to(jnp.exp(p["logstd"].reshape(1, -1)), mean.shape)
    return mean, std, v


if __name__ == "__main__":
    key = jax.random.PRNGKey(0)
    kx, kp = jax.random.split(key)

    # TODO(synk): PyTorch builds the AddBias zeros tensor in float64; TPU has
    # no f64, so everything here is float32.
    B, D_IN, HID, ACT = 256, 32, 64, 4
    x = jax.random.normal(kx, (B, D_IN), dtype=jnp.float32)
    params = init_params(kp, D_IN, ACT, HID)

    # tb=128 -> grid=(2,): exercises the 128-aligned batch-tiled "parallel"
    # path (what v7x's two TensorCores want); default tb would use grid=(1,).
    mean, std, v = ppo_net_forward(x, params, tb=128)
    jax.block_until_ready((mean, std, v))

    mean_r, std_r, v_r = _ref_forward(x, params)
    assert jnp.allclose(mean, mean_r, atol=1e-4, rtol=1e-4), "mean mismatch"
    assert jnp.allclose(std, std_r, atol=1e-4, rtol=1e-4), "std mismatch"
    assert jnp.allclose(v, v_r, atol=1e-4, rtol=1e-4), "value mismatch"

    # Also check the default (single-tile) path.
    mean2, std2, v2 = ppo_net_forward(x, params)
    jax.block_until_ready((mean2, std2, v2))
    assert jnp.allclose(mean2, mean_r, atol=1e-4, rtol=1e-4), "mean mismatch (default tile)"
    assert jnp.allclose(v2, v_r, atol=1e-4, rtol=1e-4), "value mismatch (default tile)"

    print("KERNEL_OK")
</pallas_src>

<mosaic_0001>
module attributes {stable_mosaic.version = 11 : i64} {
  func.func @_ppo_fwd_kernel(%arg0: i32, %arg1: memref<32x128xf32, #tpu.memory_space<vmem>>, %arg2: memref<128x32xf32, #tpu.memory_space<vmem>>, %arg3: memref<128x1xf32, #tpu.memory_space<vmem>>, %arg4: memref<128x128xf32, #tpu.memory_space<vmem>>, %arg5: memref<128x1xf32, #tpu.memory_space<vmem>>, %arg6: memref<5x128xf32, #tpu.memory_space<vmem>>, %arg7: memref<5x1xf32, #tpu.memory_space<vmem>>, %arg8: memref<5x128xf32, #tpu.memory_space<vmem>>) attributes {dimension_semantics = [#tpu.dimension_semantics<parallel>], iteration_bounds = array<i64: 2>, scalar_prefetch = 0 : i64, scratch_operands = 0 : i64, tpu.core_type = #tpu.core_type<tc>, window_params = [{transform_indices = @transform_0, window_bounds = array<i64: 32, 128>}, {pipeline_mode = #tpu.pipeline_mode<synchronous>, transform_indices = @transform_1, window_bounds = array<i64: 128, 32>}, {pipeline_mode = #tpu.pipeline_mode<synchronous>, transform_indices = @transform_2, window_bounds = array<i64: 128, 1>}, {pipeline_mode = #tpu.pipeline_mode<synchronous>, transform_indices = @transform_3, window_bounds = array<i64: 128, 128>}, {pipeline_mode = #tpu.pipeline_mode<synchronous>, transform_indices = @transform_4, window_bounds = array<i64: 128, 1>}, {pipeline_mode = #tpu.pipeline_mode<synchronous>, transform_indices = @transform_5, window_bounds = array<i64: 5, 128>}, {pipeline_mode = #tpu.pipeline_mode<synchronous>, transform_indices = @transform_6, window_bounds = array<i64: 5, 1>}, {transform_indices = @transform_7, window_bounds = array<i64: 5, 128>}]} {
    %c0 = arith.constant 0 : index
    %c0_0 = arith.constant 0 : index
    %0 = vector.load %arg1[%c0, %c0_0] : memref<32x128xf32, #tpu.memory_space<vmem>>, vector<32x128xf32>
    %c0_1 = arith.constant 0 : index
    %c0_2 = arith.constant 0 : index
    %1 = vector.load %arg2[%c0_1, %c0_2] : memref<128x32xf32, #tpu.memory_space<vmem>>, vector<128x32xf32>
    %cst = arith.constant dense<0.000000e+00> : vector<128x128xf32>
    %2 = tpu.matmul %1, %0, %cst {dimension_numbers = #tpu.dot_dimension_numbers<[1], [0], [0], [1], [0, 0, 1, 1], [], []>} : vector<128x32xf32>, vector<32x128xf32>, vector<128x128xf32> -> vector<128x128xf32>
    %c0_3 = arith.constant 0 : index
    %c0_4 = arith.constant 0 : index
    %3 = vector.load %arg3[%c0_3, %c0_4] : memref<128x1xf32, #tpu.memory_space<vmem>>, vector<128x1xf32>
    %4 = vector.broadcast %3 : vector<128x1xf32> to vector<128x128xf32>
    %5 = arith.addf %2, %4 : vector<128x128xf32>
    %6 = math.tanh %5 : vector<128x128xf32>
    %c0_5 = arith.constant 0 : index
    %c0_6 = arith.constant 0 : index
    %7 = vector.load %arg4[%c0_5, %c0_6] : memref<128x128xf32, #tpu.memory_space<vmem>>, vector<128x128xf32>
    %cst_7 = arith.constant dense<0.000000e+00> : vector<128x128xf32>
    %8 = tpu.matmul %7, %6, %cst_7 {dimension_numbers = #tpu.dot_dimension_numbers<[1], [0], [0], [1], [0, 0, 1, 1], [], []>} : vector<128x128xf32>, vector<128x128xf32>, vector<128x128xf32> -> vector<128x128xf32>
    %c0_8 = arith.constant 0 : index
    %c0_9 = arith.constant 0 : index
    %9 = vector.load %arg5[%c0_8, %c0_9] : memref<128x1xf32, #tpu.memory_space<vmem>>, vector<128x1xf32>
    %10 = vector.broadcast %9 : vector<128x1xf32> to vector<128x128xf32>
    %11 = arith.addf %8, %10 : vector<128x128xf32>
    %12 = math.tanh %11 : vector<128x128xf32>
    %c0_10 = arith.constant 0 : index
    %c0_11 = arith.constant 0 : index
    %13 = vector.load %arg6[%c0_10, %c0_11] : memref<5x128xf32, #tpu.memory_space<vmem>>, vector<5x128xf32>
    %cst_12 = arith.constant dense<0.000000e+00> : vector<5x128xf32>
    %14 = tpu.matmul %13, %12, %cst_12 {dimension_numbers = #tpu.dot_dimension_numbers<[1], [0], [0], [1], [0, 0, 1, 1], [], []>} : vector<5x128xf32>, vector<128x128xf32>, vector<5x128xf32> -> vector<5x128xf32>
    %c0_13 = arith.constant 0 : index
    %c0_14 = arith.constant 0 : index
    %15 = vector.load %arg7[%c0_13, %c0_14] : memref<5x1xf32, #tpu.memory_space<vmem>>, vector<5x1xf32>
    %16 = vector.broadcast %15 : vector<5x1xf32> to vector<5x128xf32>
    %17 = arith.addf %14, %16 : vector<5x128xf32>
    %c0_15 = arith.constant 0 : index
    %c0_16 = arith.constant 0 : index
    %18 = vector.load %arg8[%c0_15, %c0_16] : memref<5x128xf32, #tpu.memory_space<vmem>>, vector<5x128xf32>
    tpu.vector_store %arg8[%c0_15, %c0_16], %17 {strides = array<i32>} : memref<5x128xf32, #tpu.memory_space<vmem>>, vector<5x128xf32>,
    return
  }
  func.func @transform_0(%arg0: i32) -> (i32, i32) {
    %c0_i32 = arith.constant 0 : i32
    %c0_i32_0 = arith.constant 0 : i32
    return %c0_i32, %arg0 : i32, i32
  }
  func.func @transform_1(%arg0: i32) -> (i32, i32) {
    %c0_i32 = arith.constant 0 : i32
    %c0_i32_0 = arith.constant 0 : i32
    %c0_i32_1 = arith.constant 0 : i32
    return %c0_i32, %c0_i32_0 : i32, i32
  }
  func.func @transform_2(%arg0: i32) -> (i32, i32) {
    %c0_i32 = arith.constant 0 : i32
    %c0_i32_0 = arith.constant 0 : i32
    %c0_i32_1 = arith.constant 0 : i32
    return %c0_i32, %c0_i32_0 : i32, i32
  }
  func.func @transform_3(%arg0: i32) -> (i32, i32) {
    %c0_i32 = arith.constant 0 : i32
    %c0_i32_0 = arith.constant 0 : i32
    %c0_i32_1 = arith.constant 0 : i32
    return %c0_i32, %c0_i32_0 : i32, i32
  }
  func.func @transform_4(%arg0: i32) -> (i32, i32) {
    %c0_i32 = arith.constant 0 : i32
    %c0_i32_0 = arith.constant 0 : i32
    %c0_i32_1 = arith.constant 0 : i32
    return %c0_i32, %c0_i32_0 : i32, i32
  }
  func.func @transform_5(%arg0: i32) -> (i32, i32) {
    %c0_i32 = arith.constant 0 : i32
    %c0_i32_0 = arith.constant 0 : i32
    %c0_i32_1 = arith.constant 0 : i32
    return %c0_i32, %c0_i32_0 : i32, i32
  }
  func.func @transform_6(%arg0: i32) -> (i32, i32) {
    %c0_i32 = arith.constant 0 : i32
    %c0_i32_0 = arith.constant 0 : i32
    %c0_i32_1 = arith.constant 0 : i32
    return %c0_i32, %c0_i32_0 : i32, i32
  }
  func.func @transform_7(%arg0: i32) -> (i32, i32) {
    %c0_i32 = arith.constant 0 : i32
    %c0_i32_0 = arith.constant 0 : i32
    return %c0_i32, %arg0 : i32, i32
  }
}

</mosaic_0001>

<llo_original>
// kernel: tpu_custom_call.1
$region0: #{tpu_custom_call.1}
  #allocation0 [shape = 'u32[]', space=smem, size = 0x4, offset = 0x4, fixed_abs, tag = 'smem constant byte address 0x4 - core index']
  #allocation1 [shape = 'u32[72,128]{1,0:T(1,128)}', space=vmem, size = 0x9000, scoped, tag = 'internal scratch']
  %s0 = inlined_call_operand.vmem [shape: f32[32,256], index: 0, kind: input, shape index: {}]
  %s1 = inlined_call_operand.vmem [shape: f32[128,32], index: 1, kind: input, shape index: {}]
  %s2 = inlined_call_operand.vmem [shape: f32[128,1], index: 2, kind: input, shape index: {}]
  %s3 = inlined_call_operand.vmem [shape: f32[128,128], index: 3, kind: input, shape index: {}]
  %s4 = inlined_call_operand.vmem [shape: f32[128,1], index: 4, kind: input, shape index: {}]
  %s5 = inlined_call_operand.vmem [shape: f32[5,128], index: 5, kind: input, shape index: {}]
  %s6 = inlined_call_operand.vmem [shape: f32[5,1], index: 6, kind: input, shape index: {}]
  %s7 = inlined_call_operand.hbm [shape: f32[5,256], index: 7, kind: output, shape index: {}]
  %s8 = sld [smem:[#allocation0]]
  $region99: #{tpu_custom_call.1} parent=0
    _
  %s10 = ssub.s32 1, %s8
  %s11 = scalar_select 0, %s10, %s8
  $region1: #{tpu_custom_call.1} parent=0
    #allocation2 [shape = 'u8[32768]{0}', space=vmem, size = 0x8000, scoped, tag = 'input window, operand 0']
    #allocation3 [shape = 'u8[8192]{0}', space=vmem, size = 0x2000, scoped, tag = 'output window, operand 0']
    #allocation4 [shape = 's32[2]{0}', space=sflag, size = 0x8, scoped, tag = 'scoped memory for tpu_custom_call.1']
    %12 = vsyncpa [#allocation4], 0
    %s13 = scalar_lea.sflag [#allocation4], 1
    %14 = vsyncpa %s13, 0
    loop: start=0, step=1, limit=4
    $region2: #{tpu_custom_call.1} parent=1 // loop_pre_header
      _
    $region3: #{tpu_custom_call.1} parent=1 // loop_header
      %s16 = sphi 0, %s20
      %p17 = scmp.ge.s32.totalorder %s16, 4
      %s26 = sphi 0, %s28
      %s29 = sphi 0, %s26
      %s30 = sphi 0, %s29
      %s46 = sphi 0, %s30
      %s50 = sphi 0, %s50
      %s52 = sphi 0, %s50
      %s53 = sphi 0, %s52
      %s67 = sphi 0, %s53
      %s71 = sphi 0, %s71
      %s73 = sphi 0, %s71
      %s74 = sphi 0, %s73
      %s88 = sphi 0, %s74
      %s92 = sphi 0, %s92
      %s94 = sphi 0, %s92
      %s95 = sphi 0, %s94
      %s109 = sphi 0, %s95
      %s113 = sphi 0, %s113
      %s115 = sphi 0, %s113
      %s116 = sphi 0, %s115
      %s130 = sphi 0, %s116
      %s134 = sphi 0, %s134
      %s136 = sphi 0, %s134
      %s137 = sphi 0, %s136
      %s151 = sphi 0, %s137
      %s155 = sphi 0, %s155
      %s157 = sphi 0, %s155
      %s158 = sphi 0, %s157
      %s172 = sphi 0, %s158
      %s178 = sphi 0, %s180
      %s181 = sphi 0, %s178
      %s182 = sphi 0, %s181
      %s198 = sphi 0, %s182
    $region4: #{tpu_custom_call.1} parent=1 // loop_header_branch
      %19 = sbr.rel (%p17) target = $region8
    $region5: #{tpu_custom_call.1} parent=1 // loop_body
      %s21 = ssub.s32 %s16, 1
      %s22 = ssub.s32 %s16, 2
      %s23 = sadd.s32 %s16, 1
      %s24 = ssub.s32 %s16, %s23
      %p25 = scmp.eq.s32.totalorder %s24, 0
      %s27 = sadd.s32 %s26, 1
      %s28 = scalar_select %p25, %s26, %s27
      %p31 = pneg %p25
      %p32 = scmp.eq.s32.totalorder %s16, 1
      %p33 = por %p31, %p32
      %p34 = scmp.ne.s32.totalorder %s26, %s29
      %p35 = scmp.eq.s32.totalorder %s16, 0
      %p36 = por %p34, %p35
      %p37 = scmp.ne.s32.totalorder %s26, %s29
      %p38 = scmp.eq.s32.totalorder %s21, 1
      %p39 = por %p37, %p38
      %p40 = scmp.ne.s32.totalorder %s29, %s30
      %p41 = scmp.eq.s32.totalorder %s21, 0
      %p42 = por %p40, %p41
      %p43 = scmp.ne.s32.totalorder %s29, %s30
      %p44 = scmp.eq.s32.totalorder %s22, 1
      %p45 = por %p43, %p44
      %p47 = scmp.ne.s32.totalorder %s30, %s46
      %p48 = scmp.eq.s32.totalorder %s22, 0
      %p49 = por %p47, %p48
      %s51 = sadd.s32 %s50, 1
      %p54 = scmp.eq.s32.totalorder %s16, 1
      %p55 = scmp.ne.s32.totalorder %s50, %s52
      %p56 = scmp.eq.s32.totalorder %s16, 0
      %p57 = por %p55, %p56
      %p58 = scmp.ne.s32.totalorder %s50, %s52
      %p59 = scmp.eq.s32.totalorder %s21, 1
      %p60 = por %p58, %p59
      %p61 = scmp.ne.s32.totalorder %s52, %s53
      %p62 = scmp.eq.s32.totalorder %s21, 0
      %p63 = por %p61, %p62
      %p64 = scmp.ne.s32.totalorder %s52, %s53
      %p65 = scmp.eq.s32.totalorder %s22, 1
      %p66 = por %p64, %p65
      %p68 = scmp.ne.s32.totalorder %s53, %s67
      %p69 = scmp.eq.s32.totalorder %s22, 0
      %p70 = por %p68, %p69
      %s72 = sadd.s32 %s71, 1
      %p75 = scmp.eq.s32.totalorder %s16, 1
      %p76 = scmp.ne.s32.totalorder %s71, %s73
      %p77 = scmp.eq.s32.totalorder %s16, 0
      %p78 = por %p76, %p77
      %p79 = scmp.ne.s32.totalorder %s71, %s73
      %p80 = scmp.eq.s32.totalorder %s21, 1
      %p81 = por %p79, %p80
      %p82 = scmp.ne.s32.totalorder %s73, %s74
      %p83 = scmp.eq.s32.totalorder %s21, 0
      %p84 = por %p82, %p83
      %p85 = scmp.ne.s32.totalorder %s73, %s74
      %p86 = scmp.eq.s32.totalorder %s22, 1
      %p87 = por %p85, %p86
      %p89 = scmp.ne.s32.totalorder %s74, %s88
      %p90 = scmp.eq.s32.totalorder %s22, 0
      %p91 = por %p89, %p90
      %s93 = sadd.s32 %s92, 1
      %p96 = scmp.eq.s32.totalorder %s16, 1
      %p97 = scmp.ne.s32.totalorder %s92, %s94
      %p98 = scmp.eq.s32.totalorder %s16, 0
      %p99 = por %p97, %p98
      %p100 = scmp.ne.s32.totalorder %s92, %s94
      %p101 = scmp.eq.s32.totalorder %s21, 1
      %p102 = por %p100, %p101
      %p103 = scmp.ne.s32.totalorder %s94, %s95
      %p104 = scmp.eq.s32.totalorder %s21, 0
      %p105 = por %p103, %p104
      %p106 = scmp.ne.s32.totalorder %s94, %s95
      %p107 = scmp.eq.s32.totalorder %s22, 1
      %p108 = por %p106, %p107
      %p110 = scmp.ne.s32.totalorder %s95, %s109
      %p111 = scmp.eq.s32.totalorder %s22, 0
      %p112 = por %p110, %p111
      %s114 = sadd.s32 %s113, 1
      %p117 = scmp.eq.s32.totalorder %s16, 1
      %p118 = scmp.ne.s32.totalorder %s113, %s115
      %p119 = scmp.eq.s32.totalorder %s16, 0
      %p120 = por %p118, %p119
      %p121 = scmp.ne.s32.totalorder %s113, %s115
      %p122 = scmp.eq.s32.totalorder %s21, 1
      %p123 = por %p121, %p122
      %p124 = scmp.ne.s32.totalorder %s115, %s116
      %p125 = scmp.eq.s32.totalorder %s21, 0
      %p126 = por %p124, %p125
      %p127 = scmp.ne.s32.totalorder %s115, %s116
      %p128 = scmp.eq.s32.totalorder %s22, 1
      %p129 = por %p127, %p128
      %p131 = scmp.ne.s32.totalorder %s116, %s130
      %p132 = scmp.eq.s32.totalorder %s22, 0
      %p133 = por %p131, %p132
      %s135 = sadd.s32 %s134, 1
      %p138 = scmp.eq.s32.totalorder %s16, 1
      %p139 = scmp.ne.s32.totalorder %s134, %s136
      %p140 = scmp.eq.s32.totalorder %s16, 0
      %p141 = por %p139, %p140
      %p142 = scmp.ne.s32.totalorder %s134, %s136
      %p143 = scmp.eq.s32.totalorder %s21, 1
      %p144 = por %p142, %p143
      %p145 = scmp.ne.s32.totalorder %s136, %s137
      %p146 = scmp.eq.s32.totalorder %s21, 0
      %p147 = por %p145, %p146
      %p148 = scmp.ne.s32.totalorder %s136, %s137
      %p149 = scmp.eq.s32.totalorder %s22, 1
      %p150 = por %p148, %p149
      %p152 = scmp.ne.s32.totalorder %s137, %s151
      %p153 = scmp.eq.s32.totalorder %s22, 0
      %p154 = por %p152, %p153
      %s156 = sadd.s32 %s155, 1
      %p159 = scmp.eq.s32.totalorder %s16, 1
      %p160 = scmp.ne.s32.totalorder %s155, %s157
      %p161 = scmp.eq.s32.totalorder %s16, 0
      %p162 = por %p160, %p161
      %p163 = scmp.ne.s32.totalorder %s155, %s157
      %p164 = scmp.eq.s32.totalorder %s21, 1
      %p165 = por %p163, %p164
      %p166 = scmp.ne.s32.totalorder %s157, %s158
      %p167 = scmp.eq.s32.totalorder %s21, 0
      %p168 = por %p166, %p167
      %p169 = scmp.ne.s32.totalorder %s157, %s158
      %p170 = scmp.eq.s32.totalorder %s22, 1
      %p171 = por %p169, %p170
      %p173 = scmp.ne.s32.totalorder %s158, %s172
      %p174 = scmp.eq.s32.totalorder %s22, 0
      %p175 = por %p173, %p174
      %s176 = ssub.s32 %s16, %s23
      %p177 = scmp.eq.s32.totalorder %s176, 0
      %s179 = sadd.s32 %s178, 1
      %s180 = scalar_select %p177, %s178, %s179
      %p183 = pneg %p177
      %p184 = scmp.eq.s32.totalorder %s16, 1
      %p185 = por %p183, %p184
      %p186 = scmp.ne.s32.totalorder %s178, %s181
      %p187 = scmp.eq.s32.totalorder %s16, 0
      %p188 = por %p186, %p187
      %p189 = scmp.ne.s32.totalorder %s178, %s181
      %p190 = scmp.eq.s32.totalorder %s21, 1
      %p191 = por %p189, %p190
      %p192 = scmp.ne.s32.totalorder %s181, %s182
      %p193 = scmp.eq.s32.totalorder %s21, 0
      %p194 = por %p192, %p193
      %p195 = scmp.ne.s32.totalorder %s181, %s182
      %p196 = scmp.eq.s32.totalorder %s22, 1
      %p197 = por %p195, %p196
      %p199 = scmp.ne.s32.totalorder %s182, %s198
      %p200 = scmp.eq.s32.totalorder %s22, 0
      %p201 = por %p199, %p200
      %p202 = scmp.le.s32.totalorder 1, %s16
      %p203 = scmp.lt.s32.totalorder %s16, 3
      %p204 = pnand %p202, %p203
      %p205 = pneg %p204
      // Predicated region
      $region9: #{tpu_custom_call.1} parent=5 // pred_check
        _
      $region10: #{tpu_custom_call.1} parent=5 // pred_check_branch
        %207 = sbr.rel (%p204) target = $region12
      $region11: #{tpu_custom_call.1} parent=5 // pred_region
        %s208 = ssub.s32 %s16, 1
        // Predicated region
        $region13: #{tpu_custom_call.1} parent=11 // pred_check
          %p209 = pneg %p63
        $region14: #{tpu_custom_call.1} parent=11 // pred_check_branch
          %211 = sbr.rel (%p209) target = $region16
        $region15: #{tpu_custom_call.1} parent=11 // pred_region
          _
        $region16: #{tpu_custom_call.1} parent=11 // pred_fallthru
          _
        // Predicated region
        $region17: #{tpu_custom_call.1} parent=11 // pred_check
          %p212 = pneg %p84
        $region18: #{tpu_custom_call.1} parent=11 // pred_check_branch
          %214 = sbr.rel (%p212) target = $region20
        $region19: #{tpu_custom_call.1} parent=11 // pred_region
          _
        $region20: #{tpu_custom_call.1} parent=11 // pred_fallthru
          _
        // Predicated region
        $region21: #{tpu_custom_call.1} parent=11 // pred_check
          %p215 = pneg %p105
        $region22: #{tpu_custom_call.1} parent=11 // pred_check_branch
          %217 = sbr.rel (%p215) target = $region24
        $region23: #{tpu_custom_call.1} parent=11 // pred_region
          _
        $region24: #{tpu_custom_call.1} parent=11 // pred_fallthru
          _
        // Predicated region
        $region25: #{tpu_custom_call.1} parent=11 // pred_check
          %p218 = pneg %p126
        $region26: #{tpu_custom_call.1} parent=11 // pred_check_branch
          %220 = sbr.rel (%p218) target = $region28
        $region27: #{tpu_custom_call.1} parent=11 // pred_region
          _
        $region28: #{tpu_custom_call.1} parent=11 // pred_fallthru
          _
        // Predicated region
        $region29: #{tpu_custom_call.1} parent=11 // pred_check
          %p221 = pneg %p147
        $region30: #{tpu_custom_call.1} parent=11 // pred_check_branch
          %223 = sbr.rel (%p221) target = $region32
        $region31: #{tpu_custom_call.1} parent=11 // pred_region
          _
        $region32: #{tpu_custom_call.1} parent=11 // pred_fallthru
          _
        // Predicated region
        $region33: #{tpu_custom_call.1} parent=11 // pred_check
          %p224 = pneg %p168
        $region34: #{tpu_custom_call.1} parent=11 // pred_check_branch
          %226 = sbr.rel (%p224) target = $region36
        $region35: #{tpu_custom_call.1} parent=11 // pred_region
          _
        $region36: #{tpu_custom_call.1} parent=11 // pred_fallthru
          _
      $region12: #{tpu_custom_call.1} parent=5 // pred_fallthru
        _
      %p227 = scmp.lt.s32.totalorder %s16, 2
      // Predicated region
      $region37: #{tpu_custom_call.1} parent=5 // pred_check
        %p228 = pneg %p227
      $region38: #{tpu_custom_call.1} parent=5 // pred_check_branch
        %230 = sbr.rel (%p228) target = $region40
      $region39: #{tpu_custom_call.1} parent=5 // pred_region
        // Predicated region
        $region41: #{tpu_custom_call.1} parent=39 // pred_check
          %p231 = pneg %p36
        $region42: #{tpu_custom_call.1} parent=39 // pred_check_branch
          %233 = sbr.rel (%p231) target = $region44
        $region43: #{tpu_custom_call.1} parent=39 // pred_region
          %s234 = sand.u32 %s26, 1
          %s235 = sand.u32 %s26, 1
          %s236 = smul.addr %s235, 32
          %s237 = scalar_lea.vmem [#allocation2], %s236
          %s238 = smul.addr %s16, 8
          %s239 = scalar_lea.vmem %s0, %s238
          // Predicated region
          $region45: #{tpu_custom_call.1} parent=43 // pred_check
            _
          $region46: #{tpu_custom_call.1} parent=43 // pred_check_branch
            %241 = sbr.rel (0) target = $region48
          $region47: #{tpu_custom_call.1} parent=43 // pred_region
            // Predicated region
            $region49: #{tpu_custom_call.1} parent=47 // pred_check
              _
            $region50: #{tpu_custom_call.1} parent=47 // pred_check_branch
              %243 = sbr.rel (0) target = $region52
            $region51: #{tpu_custom_call.1} parent=47 // pred_region
              // Predicated region
              $region64: #{tpu_custom_call.1} parent=51 // pred_check
                _
              $region65: #{tpu_custom_call.1} parent=51 // pred_check_branch
                %265 = sbr.rel (0) target = $region67
              $region66: #{tpu_custom_call.1} parent=51 // pred_region
                loop: start=0, step=1, limit=1
                $region68: #{tpu_custom_call.1} parent=66 // loop_pre_header
                  _
                $region69: #{tpu_custom_call.1} parent=66 // loop_header
                  %s267 = sphi 0, %s271
                  %p268 = scmp.ge.s32.totalorder %s267, 1
                  %s272 = sphi %s239, %s239
                  %s273 = sphi %s237, %s237
                $region70: #{tpu_custom_call.1} parent=66 // loop_header_branch
                  %270 = sbr.rel (%p268) target = $region74
                $region71: #{tpu_custom_call.1} parent=66 // loop_body
                  %v274 = vld [vmem:[%s272] sm:$0xff]
                  %275 = vst [vmem:[%s273] sm:$0xff] %v274
                  %v276 = vld [vmem:[%s272 + $0x10] sm:$0xff]
                  %277 = vst [vmem:[%s273 + $0x8] sm:$0xff] %v276
                  %v278 = vld [vmem:[%s272 + $0x20] sm:$0xff]
                  %279 = vst [vmem:[%s273 + $0x10] sm:$0xff] %v278
                  %v280 = vld [vmem:[%s272 + $0x30] sm:$0xff]
                  %281 = vst [vmem:[%s273 + $0x18] sm:$0xff] %v280
                $region72: #{tpu_custom_call.1} parent=66 // loop_footer
                  %s271 = sadd.s32 1, %s267
                $region73: #{tpu_custom_call.1} parent=66 // loop_footer_branch
                  %266 = sbr.rel target = $region69
                $region74: #{tpu_custom_call.1} parent=66 // loop_exit
                  _
              $region67: #{tpu_custom_call.1} parent=51 // pred_fallthru
                _
              // Predicated region
              $region75: #{tpu_custom_call.1} parent=51 // pred_check
                _
              $region76: #{tpu_custom_call.1} parent=51 // pred_check_branch
                %283 = sbr.rel target = $region78
              $region77: #{tpu_custom_call.1} parent=51 // pred_region
                _
              $region78: #{tpu_custom_call.1} parent=51 // pred_fallthru
                _
            $region52: #{tpu_custom_call.1} parent=47 // pred_fallthru
              _
            // Predicated region
            $region53: #{tpu_custom_call.1} parent=47 // pred_check
              _
            $region54: #{tpu_custom_call.1} parent=47 // pred_check_branch
              %245 = sbr.rel target = $region56
            $region55: #{tpu_custom_call.1} parent=47 // pred_region
              %s247 = ssub.s32 256, 1
              loop: start=0, step=1, limit=1
              $region57: #{tpu_custom_call.1} parent=55 // loop_pre_header
                _
              $region58: #{tpu_custom_call.1} parent=55 // loop_header
                %s249 = sphi 0, %s253
                %p250 = scmp.ge.s32.totalorder %s249, 1
                %s254 = sphi %s239, %s239
                %s255 = sphi %s237, %s237
              $region59: #{tpu_custom_call.1} parent=55 // loop_header_branch
                %252 = sbr.rel (%p250) target = $region63
              $region60: #{tpu_custom_call.1} parent=55 // loop_body
                %v256 = vld [vmem:[%s254] sm:%s247]
                %257 = vst [vmem:[%s255] sm:%s247] %v256
                %v258 = vld [vmem:[%s254 + $0x10] sm:%s247]
                %259 = vst [vmem:[%s255 + $0x8] sm:%s247] %v258
                %v260 = vld [vmem:[%s254 + $0x20] sm:%s247]
                %261 = vst [vmem:[%s255 + $0x10] sm:%s247] %v260
                %v262 = vld [vmem:[%s254 + $0x30] sm:%s247]
                %263 = vst [vmem:[%s255 + $0x18] sm:%s247] %v262
              $region61: #{tpu_custom_call.1} parent=55 // loop_footer
                %s253 = sadd.s32 1, %s249
              $region62: #{tpu_custom_call.1} parent=55 // loop_footer_branch
                %248 = sbr.rel target = $region58
              $region63: #{tpu_custom_call.1} parent=55 // loop_exit
                _
            $region56: #{tpu_custom_call.1} parent=47 // pred_fallthru
              _
          $region48: #{tpu_custom_call.1} parent=43 // pred_fallthru
            _
          %284 = vnop
        $region44: #{tpu_custom_call.1} parent=39 // pred_fallthru
          _
      $region40: #{tpu_custom_call.1} parent=5 // pred_fallthru
        _
      %p285 = scmp.le.s32.totalorder 1, %s16
      %p286 = scmp.lt.s32.totalorder %s16, 3
      %p287 = pnand %p285, %p286
      %p288 = pneg %p287
      // Predicated region
      $region79: #{tpu_custom_call.1} parent=5 // pred_check
        _
      $region80: #{tpu_custom_call.1} parent=5 // pred_check_branch
        %290 = sbr.rel (%p287) target = $region82
      $region81: #{tpu_custom_call.1} parent=5 // pred_region
        %s291 = ssub.s32 %s16, 1
        %s292 = sand.u32 %s29, 1
        %s293 = sand.u32 %s29, 1
        %s294 = smul.addr %s293, 32
        %s295 = scalar_lea.vmem [#allocation2], %s294
        // Predicated region
        $region83: #{tpu_custom_call.1} parent=81 // pred_check
          %p296 = pneg %p42
        $region84: #{tpu_custom_call.1} parent=81 // pred_check_branch
          %298 = sbr.rel (%p296) target = $region86
        $region85: #{tpu_custom_call.1} parent=81 // pred_region
          _
        $region86: #{tpu_custom_call.1} parent=81 // pred_fallthru
          _
        %s299 = sand.u32 %s29, 1
        %s300 = sand.u32 %s29, 1
        %s301 = smul.addr %s300, 32
        %s302 = scalar_lea.vmem [#allocation2], %s301
        %p303 = pneg %p42
        %p304 = pneg %p39
        %p305 = pneg %p63
        %p306 = pneg %p60
        %p307 = pneg %p84
        %p308 = pneg %p81
        %p309 = pneg %p105
        %p310 = pneg %p102
        %p311 = pneg %p126
        %p312 = pneg %p123
        %p313 = pneg %p147
        %p314 = pneg %p144
        %p315 = pneg %p168
        %p316 = pneg %p165
        %p317 = pneg %p194
        %p318 = pneg %p191
        %s319 = sand.u32 %s181, 1
        %s320 = scalar_lea.sflag [#allocation4], %s319
        %s321 = sand.u32 %s181, 1
        %s322 = smul.addr %s321, 8
        %s323 = scalar_lea.vmem [#allocation3], %s322
        %v324 = vld [vmem:[%s295] sm:$0xff]
        %v325 = vld [vmem:[%s295 + $0x8] sm:$0xff]
        %v326 = vld [vmem:[%s295 + $0x10] sm:$0xff]
        %v327 = vld [vmem:[%s295 + $0x18] sm:$0xff]
        %v328 = vld [vmem:[%s1] sm:$0xff]
        %v329 = vld [vmem:[%s1 + $0x8] sm:$0xff]
        %v330 = vld [vmem:[%s1 + $0x10] sm:$0xff]
        %v331 = vld [vmem:[%s1 + $0x18] sm:$0xff]
        %v332 = vld [vmem:[%s1 + $0x20] sm:$0xff]
        %v333 = vld [vmem:[%s1 + $0x28] sm:$0xff]
        %v334 = vld [vmem:[%s1 + $0x30] sm:$0xff]
        %v335 = vld [vmem:[%s1 + $0x38] sm:$0xff]
        %v336 = vld [vmem:[%s1 + $0x40] sm:$0xff]
        %v337 = vld [vmem:[%s1 + $0x48] sm:$0xff]
        %v338 = vld [vmem:[%s1 + $0x50] sm:$0xff]
        %v339 = vld [vmem:[%s1 + $0x58] sm:$0xff]
        %v340 = vld [vmem:[%s1 + $0x60] sm:$0xff]
        %v341 = vld [vmem:[%s1 + $0x68] sm:$0xff]
        %v342 = vld [vmem:[%s1 + $0x70] sm:$0xff]
        %v343 = vld [vmem:[%s1 + $0x78] sm:$0xff]
        %v344 = vld [vmem:[%s2] sm:$0xff]
        %v345 = vld [vmem:[%s2 + $0x8] sm:$0xff]
        %v346 = vld [vmem:[%s2 + $0x10] sm:$0xff]
        %v347 = vld [vmem:[%s2 + $0x18] sm:$0xff]
        %v348 = vld [vmem:[%s2 + $0x20] sm:$0xff]
        %v349 = vld [vmem:[%s2 + $0x28] sm:$0xff]
        %v350 = vld [vmem:[%s2 + $0x30] sm:$0xff]
        %v351 = vld [vmem:[%s2 + $0x38] sm:$0xff]
        %v352 = vld [vmem:[%s2 + $0x40] sm:$0xff]
        %v353 = vld [vmem:[%s2 + $0x48] sm:$0xff]
        %v354 = vld [vmem:[%s2 + $0x50] sm:$0xff]
        %v355 = vld [vmem:[%s2 + $0x58] sm:$0xff]
        %v356 = vld [vmem:[%s2 + $0x60] sm:$0xff]
        %v357 = vld [vmem:[%s2 + $0x68] sm:$0xff]
        %v358 = vld [vmem:[%s2 + $0x70] sm:$0xff]
        %v359 = vld [vmem:[%s2 + $0x78] sm:$0xff]
        %361 = vset.pattern.permute.xlu0 0
        %362 = vperm.xlu0 %361, %v344
        %v363 = vpop.permute.xlu0 %362
        %366 = vset.pattern.permute.xlu0 0
        %367 = vperm.xlu0 %366, %v345
        %v368 = vpop.permute.xlu0 %367
        %371 = vset.pattern.permute.xlu0 0
        %372 = vperm.xlu0 %371, %v346
        %v373 = vpop.permute.xlu0 %372
        %376 = vset.pattern.permute.xlu0 0
        %377 = vperm.xlu0 %376, %v347
        %v378 = vpop.permute.xlu0 %377
        %381 = vset.pattern.permute.xlu0 0
        %382 = vperm.xlu0 %381, %v348
        %v383 = vpop.permute.xlu0 %382
        %386 = vset.pattern.permute.xlu0 0
        %387 = vperm.xlu0 %386, %v349
        %v388 = vpop.permute.xlu0 %387
        %391 = vset.pattern.permute.xlu0 0
        %392 = vperm.xlu0 %391, %v350
        %v393 = vpop.permute.xlu0 %392
        %396 = vset.pattern.permute.xlu0 0
        %397 = vperm.xlu0 %396, %v351
        %v398 = vpop.permute.xlu0 %397
        %401 = vset.pattern.permute.xlu0 0
        %402 = vperm.xlu0 %401, %v352
        %v403 = vpop.permute.xlu0 %402
        %406 = vset.pattern.permute.xlu0 0
        %407 = vperm.xlu0 %406, %v353
        %v408 = vpop.permute.xlu0 %407
        %411 = vset.pattern.permute.xlu0 0
        %412 = vperm.xlu0 %411, %v354
        %v413 = vpop.permute.xlu0 %412
        %416 = vset.pattern.permute.xlu0 0
        %417 = vperm.xlu0 %416, %v355
        %v418 = vpop.permute.xlu0 %417
        %421 = vset.pattern.permute.xlu0 0
        %422 = vperm.xlu0 %421, %v356
        %v423 = vpop.permute.xlu0 %422
        %426 = vset.pattern.permute.xlu0 0
        %427 = vperm.xlu0 %426, %v357
        %v428 = vpop.permute.xlu0 %427
        %431 = vset.pattern.permute.xlu0 0
        %432 = vperm.xlu0 %431, %v358
        %v433 = vpop.permute.xlu0 %432
        %436 = vset.pattern.permute.xlu0 0
        %437 = vperm.xlu0 %436, %v359
        %v438 = vpop.permute.xlu0 %437
        %vm440 = vcmask 261120
        %v442 = vsel %vm440, %v328, 0
        %v445 = vsel %vm440, %v329, 0
        %v448 = vsel %vm440, %v330, 0
        %v451 = vsel %vm440, %v331, 0
        %v454 = vsel %vm440, %v332, 0
        %v457 = vsel %vm440, %v333, 0
        %v460 = vsel %vm440, %v334, 0
        %v463 = vsel %vm440, %v335, 0
        %v466 = vsel %vm440, %v336, 0
        %v469 = vsel %vm440, %v337, 0
        %v472 = vsel %vm440, %v338, 0
        %v475 = vsel %vm440, %v339, 0
        %v478 = vsel %vm440, %v340, 0
        %v481 = vsel %vm440, %v341, 0
        %v484 = vsel %vm440, %v342, 0
        %v487 = vsel %vm440, %v343, 0
        %489 = vmatpush.msra.mxu0 0.0
        %490 = vmatpush.msra.mxu0 0.0
        %491 = vmatpush.msra.mxu0 0.0
        %492 = vmatpush.msra.mxu0 0.0
        %493 = vmatpush.msra.mxu0 0.0
        %494 = vmatpush.msra.mxu0 0.0
        %495 = vmatpush.msra.mxu0 0.0
        %496 = vmatpush.msra.mxu0 0.0
        %497 = vmatpush.msra.mxu0 0.0
        %498 = vmatpush.msra.mxu0 0.0
        %499 = vmatpush.msra.mxu0 0.0
        %500 = vmatpush.msra.mxu0 0.0
        %501 = vmatpush.msra.mxu0 %v327
        %502 = vmatpush.msra.mxu0 %v326
        %503 = vmatpush.msra.mxu0 %v325
        %504 = vmatpush.msra.mxu0 %v324
        %505 = vmatmul.f32.gmra.mxu0 %v442
        %v506 = vpop.f32.mrf.mxu0
        %v507 = vadd.f32 %v363, %v506
        %508 = vmatmul.f32.gmra.mxu0 %v445
        %v509 = vpop.f32.mrf.mxu0
        %v510 = vadd.f32 %v368, %v509
        %511 = vmatmul.f32.gmra.mxu0 %v448
        %v512 = vpop.f32.mrf.mxu0
        %v513 = vadd.f32 %v373, %v512
        %514 = vmatmul.f32.gmra.mxu0 %v451
        %v515 = vpop.f32.mrf.mxu0
        %v516 = vadd.f32 %v378, %v515
        %517 = vmatmul.f32.gmra.mxu0 %v454
        %v518 = vpop.f32.mrf.mxu0
        %v519 = vadd.f32 %v383, %v518
        %520 = vmatmul.f32.gmra.mxu0 %v457
        %v521 = vpop.f32.mrf.mxu0
        %v522 = vadd.f32 %v388, %v521
        %523 = vmatmul.f32.gmra.mxu0 %v460
        %v524 = vpop.f32.mrf.mxu0
        %v525 = vadd.f32 %v393, %v524
        %526 = vmatmul.f32.gmra.mxu0 %v463
        %v527 = vpop.f32.mrf.mxu0
        %v528 = vadd.f32 %v398, %v527
        %529 = vmatmul.f32.gmra.mxu0 %v466
        %v530 = vpop.f32.mrf.mxu0
        %v531 = vadd.f32 %v403, %v530
        %532 = vmatmul.f32.gmra.mxu0 %v469
        %v533 = vpop.f32.mrf.mxu0
        %v534 = vadd.f32 %v408, %v533
        %535 = vmatmul.f32.gmra.mxu0 %v472
        %v536 = vpop.f32.mrf.mxu0
        %v537 = vadd.f32 %v413, %v536
        %538 = vmatmul.f32.gmra.mxu0 %v475
        %v539 = vpop.f32.mrf.mxu0
        %v540 = vadd.f32 %v418, %v539
        %541 = vmatmul.f32.gmra.mxu0 %v478
        %v542 = vpop.f32.mrf.mxu0
        %v543 = vadd.f32 %v423, %v542
        %544 = vmatmul.f32.gmra.mxu0 %v481
        %v545 = vpop.f32.mrf.mxu0
        %v546 = vadd.f32 %v428, %v545
        %547 = vmatmul.f32.gmra.mxu0 %v484
        %v548 = vpop.f32.mrf.mxu0
        %v549 = vadd.f32 %v433, %v548
        %550 = vmatmul.f32.gmra.mxu0 %v487
        %v551 = vpop.f32.mrf.mxu0
        %v552 = vadd.f32 %v438, %v551
        %553 = vdwg.mxu0
        %v554 = vtanh.pop %v507
        %v555 = vtanh.pop %v510
        %v556 = vtanh.pop %v513
        %v557 = vtanh.pop %v516
        %v558 = vtanh.pop %v519
        %v559 = vtanh.pop %v522
        %v560 = vtanh.pop %v525
        %v561 = vtanh.pop %v528
        %v562 = vtanh.pop %v531
        %v563 = vtanh.pop %v534
        %v564 = vtanh.pop %v537
        %v565 = vtanh.pop %v540
        %v566 = vtanh.pop %v543
        %v567 = vtanh.pop %v546
        %v568 = vtanh.pop %v549
        %v569 = vtanh.pop %v552
        %v570 = vld [vmem:[%s3] sm:$0xff]
        %v571 = vld [vmem:[%s3 + $0x8] sm:$0xff]
        %v572 = vld [vmem:[%s3 + $0x10] sm:$0xff]
        %v573 = vld [vmem:[%s3 + $0x18] sm:$0xff]
        %v574 = vld [vmem:[%s3 + $0x20] sm:$0xff]
        %v575 = vld [vmem:[%s3 + $0x28] sm:$0xff]
        %v576 = vld [vmem:[%s3 + $0x30] sm:$0xff]
        %v577 = vld [vmem:[%s3 + $0x38] sm:$0xff]
        %v578 = vld [vmem:[%s3 + $0x40] sm:$0xff]
        %v579 = vld [vmem:[%s3 + $0x48] sm:$0xff]
        %v580 = vld [vmem:[%s3 + $0x50] sm:$0xff]
        %v581 = vld [vmem:[%s3 + $0x58] sm:$0xff]
        %v582 = vld [vmem:[%s3 + $0x60] sm:$0xff]
        %v583 = vld [vmem:[%s3 + $0x68] sm:$0xff]
        %v584 = vld [vmem:[%s3 + $0x70] sm:$0xff]
        %v585 = vld [vmem:[%s3 + $0x78] sm:$0xff]
        %v586 = vld [vmem:[%s4] sm:$0xff]
        %v587 = vld [vmem:[%s4 + $0x8] sm:$0xff]
        %v588 = vld [vmem:[%s4 + $0x10] sm:$0xff]
        %v589 = vld [vmem:[%s4 + $0x18] sm:$0xff]
        %v590 = vld [vmem:[%s4 + $0x20] sm:$0xff]
        %v591 = vld [vmem:[%s4 + $0x28] sm:$0xff]
        %v592 = vld [vmem:[%s4 + $0x30] sm:$0xff]
        %v593 = vld [vmem:[%s4 + $0x38] sm:$0xff]
        %v594 = vld [vmem:[%s4 + $0x40] sm:$0xff]
        %v595 = vld [vmem:[%s4 + $0x48] sm:$0xff]
        %v596 = vld [vmem:[%s4 + $0x50] sm:$0xff]
        %v597 = vld [vmem:[%s4 + $0x58] sm:$0xff]
        %v598 = vld [vmem:[%s4 + $0x60] sm:$0xff]
        %v599 = vld [vmem:[%s4 + $0x68] sm:$0xff]
        %v600 = vld [vmem:[%s4 + $0x70] sm:$0xff]
        %v601 = vld [vmem:[%s4 + $0x78] sm:$0xff]
        %603 = vset.pattern.permute.xlu0 0
        %604 = vperm.xlu0 %603, %v586
        %v605 = vpop.permute.xlu0 %604
        %608 = vset.pattern.permute.xlu0 0
        %609 = vperm.xlu0 %608, %v587
        %v610 = vpop.permute.xlu0 %609
        %613 = vset.pattern.permute.xlu0 0
        %614 = vperm.xlu0 %613, %v588
        %v615 = vpop.permute.xlu0 %614
        %618 = vset.pattern.permute.xlu0 0
        %619 = vperm.xlu0 %618, %v589
        %v620 = vpop.permute.xlu0 %619
        %623 = vset.pattern.permute.xlu0 0
        %624 = vperm.xlu0 %623, %v590
        %v625 = vpop.permute.xlu0 %624
        %628 = vset.pattern.permute.xlu0 0
        %629 = vperm.xlu0 %628, %v591
        %v630 = vpop.permute.xlu0 %629
        %633 = vset.pattern.permute.xlu0 0
        %634 = vperm.xlu0 %633, %v592
        %v635 = vpop.permute.xlu0 %634
        %638 = vset.pattern.permute.xlu0 0
        %639 = vperm.xlu0 %638, %v593
        %v640 = vpop.permute.xlu0 %639
        %643 = vset.pattern.permute.xlu0 0
        %644 = vperm.xlu0 %643, %v594
        %v645 = vpop.permute.xlu0 %644
        %648 = vset.pattern.permute.xlu0 0
        %649 = vperm.xlu0 %648, %v595
        %v650 = vpop.permute.xlu0 %649
        %653 = vset.pattern.permute.xlu0 0
        %654 = vperm.xlu0 %653, %v596
        %v655 = vpop.permute.xlu0 %654
        %658 = vset.pattern.permute.xlu0 0
        %659 = vperm.xlu0 %658, %v597
        %v660 = vpop.permute.xlu0 %659
        %663 = vset.pattern.permute.xlu0 0
        %664 = vperm.xlu0 %663, %v598
        %v665 = vpop.permute.xlu0 %664
        %668 = vset.pattern.permute.xlu0 0
        %669 = vperm.xlu0 %668, %v599
        %v670 = vpop.permute.xlu0 %669
        %673 = vset.pattern.permute.xlu0 0
        %674 = vperm.xlu0 %673, %v600
        %v675 = vpop.permute.xlu0 %674
        %678 = vset.pattern.permute.xlu0 0
        %679 = vperm.xlu0 %678, %v601
        %v680 = vpop.permute.xlu0 %679
        %682 = vmatpush.msra.mxu0 %v569
        %683 = vmatpush.msra.mxu0 %v568
        %684 = vmatpush.msra.mxu0 %v567
        %685 = vmatpush.msra.mxu0 %v566
        %686 = vmatpush.msra.mxu0 %v565
        %687 = vmatpush.msra.mxu0 %v564
        %688 = vmatpush.msra.mxu0 %v563
        %689 = vmatpush.msra.mxu0 %v562
        %690 = vmatpush.msra.mxu0 %v561
        %691 = vmatpush.msra.mxu0 %v560
        %692 = vmatpush.msra.mxu0 %v559
        %693 = vmatpush.msra.mxu0 %v558
        %694 = vmatpush.msra.mxu0 %v557
        %695 = vmatpush.msra.mxu0 %v556
        %696 = vmatpush.msra.mxu0 %v555
        %697 = vmatpush.msra.mxu0 %v554
        %698 = vmatmul.f32.gmra.mxu0 %v570
        %v699 = vpop.f32.mrf.mxu0
        %v700 = vadd.f32 %v605, %v699
        %701 = vmatmul.f32.gmra.mxu0 %v571
        %v702 = vpop.f32.mrf.mxu0
        %v703 = vadd.f32 %v610, %v702
        %704 = vmatmul.f32.gmra.mxu0 %v572
        %v705 = vpop.f32.mrf.mxu0
        %v706 = vadd.f32 %v615, %v705
        %707 = vmatmul.f32.gmra.mxu0 %v573
        %v708 = vpop.f32.mrf.mxu0
        %v709 = vadd.f32 %v620, %v708
        %710 = vmatmul.f32.gmra.mxu0 %v574
        %v711 = vpop.f32.mrf.mxu0
        %v712 = vadd.f32 %v625, %v711
        %713 = vmatmul.f32.gmra.mxu0 %v575
        %v714 = vpop.f32.mrf.mxu0
        %v715 = vadd.f32 %v630, %v714
        %716 = vmatmul.f32.gmra.mxu0 %v576
        %v717 = vpop.f32.mrf.mxu0
        %v718 = vadd.f32 %v635, %v717
        %719 = vmatmul.f32.gmra.mxu0 %v577
        %v720 = vpop.f32.mrf.mxu0
        %v721 = vadd.f32 %v640, %v720
        %722 = vmatmul.f32.gmra.mxu0 %v578
        %v723 = vpop.f32.mrf.mxu0
        %v724 = vadd.f32 %v645, %v723
        %725 = vmatmul.f32.gmra.mxu0 %v579
        %v726 = vpop.f32.mrf.mxu0
        %v727 = vadd.f32 %v650, %v726
        %728 = vmatmul.f32.gmra.mxu0 %v580
        %v729 = vpop.f32.mrf.mxu0
        %v730 = vadd.f32 %v655, %v729
        %731 = vmatmul.f32.gmra.mxu0 %v581
        %v732 = vpop.f32.mrf.mxu0
        %v733 = vadd.f32 %v660, %v732
        %734 = vmatmul.f32.gmra.mxu0 %v582
        %v735 = vpop.f32.mrf.mxu0
        %v736 = vadd.f32 %v665, %v735
        %737 = vmatmul.f32.gmra.mxu0 %v583
        %v738 = vpop.f32.mrf.mxu0
        %v739 = vadd.f32 %v670, %v738
        %740 = vmatmul.f32.gmra.mxu0 %v584
        %v741 = vpop.f32.mrf.mxu0
        %v742 = vadd.f32 %v675, %v741
        %743 = vmatmul.f32.gmra.mxu0 %v585
        %v744 = vpop.f32.mrf.mxu0
        %v745 = vadd.f32 %v680, %v744
        %746 = vdwg.mxu0
        %v747 = vtanh.pop %v700
        %v748 = vtanh.pop %v703
        %v749 = vtanh.pop %v706
        %v750 = vtanh.pop %v709
        %v751 = vtanh.pop %v712
        %v752 = vtanh.pop %v715
        %v753 = vtanh.pop %v718
        %v754 = vtanh.pop %v721
        %v755 = vtanh.pop %v724
        %v756 = vtanh.pop %v727
        %v757 = vtanh.pop %v730
        %v758 = vtanh.pop %v733
        %v759 = vtanh.pop %v736
        %v760 = vtanh.pop %v739
        %v761 = vtanh.pop %v742
        %v762 = vtanh.pop %v745
        %v763 = vld [vmem:[%s5] sm:$0x1f]
        %v764 = vld [vmem:[%s6] sm:$0x1f]
        %766 = vset.pattern.permute.xlu0 0
        %767 = vperm.xlu0 %766, %v764
        %v768 = vpop.permute.xlu0 %767
        %770 = vmatpush.msra.mxu0 %v762
        %771 = vmatpush.msra.mxu0 %v761
        %772 = vmatpush.msra.mxu0 %v760
        %773 = vmatpush.msra.mxu0 %v759
        %774 = vmatpush.msra.mxu0 %v758
        %775 = vmatpush.msra.mxu0 %v757
        %776 = vmatpush.msra.mxu0 %v756
        %777 = vmatpush.msra.mxu0 %v755
        %778 = vmatpush.msra.mxu0 %v754
        %779 = vmatpush.msra.mxu0 %v753
        %780 = vmatpush.msra.mxu0 %v752
        %781 = vmatpush.msra.mxu0 %v751
        %782 = vmatpush.msra.mxu0 %v750
        %783 = vmatpush.msra.mxu0 %v749
        %784 = vmatpush.msra.mxu0 %v748
        %785 = vmatpush.msra.mxu0 %v747
        %786 = vmatmul.f32.gmra.mxu0 %v763
        %v787 = vpop.f32.mrf.mxu0
        %v788 = vadd.f32 %v768, %v787
        %789 = vdwg.mxu0
        %790 = vst [vmem:[%s323] sm:$0x1f] %v788
        %s791 = sand.u32 %s181, 1
        %s792 = scalar_lea.sflag [#allocation4], %s791
        %s793 = sand.u32 %s181, 1
        %s794 = smul.addr %s793, 8
        %s795 = scalar_lea.vmem [#allocation3], %s794
        // Predicated region
        $region87: #{tpu_custom_call.1} parent=81 // pred_check
          %p796 = pneg %p191
        $region88: #{tpu_custom_call.1} parent=81 // pred_check_branch
          %798 = sbr.rel (%p796) target = $region90
        $region89: #{tpu_custom_call.1} parent=81 // pred_region
          %800 = vsyncadd %s792, 0
          %s801 = smul.addr %s21, 8
          %s802 = scalar_lea.hbm %s7, %s801
          %s804 = sshll.u32 %s795, 4
          %s805 = int_to_ptr.vmem [resolvable:$true] %s804
          %s806 = sshll.u32 %s802, 4
          %s807 = int_to_ptr.hbm [resolvable:$true] %s806
          %809 = dma.vmem_to_hbm [thread:$0]  %s805, 128, %s807, %s792
        $region90: #{tpu_custom_call.1} parent=81 // pred_fallthru
          _
      $region82: #{tpu_custom_call.1} parent=5 // pred_fallthru
        _
      %p810 = scmp.le.s32.totalorder 2, %s16
      // Predicated region
      $region91: #{tpu_custom_call.1} parent=5 // pred_check
        %p811 = pneg %p810
      $region92: #{tpu_custom_call.1} parent=5 // pred_check_branch
        %813 = sbr.rel (%p811) target = $region94
      $region93: #{tpu_custom_call.1} parent=5 // pred_region
        %s814 = ssub.s32 %s16, 2
        // Predicated region
        $region95: #{tpu_custom_call.1} parent=93 // pred_check
          %p815 = pneg %p197
        $region96: #{tpu_custom_call.1} parent=93 // pred_check_branch
          %817 = sbr.rel (%p815) target = $region98
        $region97: #{tpu_custom_call.1} parent=93 // pred_region
          %s818 = sand.u32 %s182, 1
          %s819 = scalar_lea.sflag [#allocation4], %s818
          %s820 = sand.u32 %s182, 1
          %s821 = smul.addr %s820, 8
          %s822 = scalar_lea.vmem [#allocation3], %s821
          %824 = dma.done %s819, 128
        $region98: #{tpu_custom_call.1} parent=93 // pred_fallthru
          _
      $region94: #{tpu_custom_call.1} parent=5 // pred_fallthru
        _
    $region6: #{tpu_custom_call.1} parent=1 // loop_footer
      %s20 = sadd.s32 1, %s16
    $region7: #{tpu_custom_call.1} parent=1 // loop_footer_branch
      %15 = sbr.rel target = $region3
    $region8: #{tpu_custom_call.1} parent=1 // loop_exit
      _
    %825 = vsyncpa [#allocation4], 1
    %s826 = scalar_lea.sflag [#allocation4], 1
    %827 = vsyncpa %s826, 1

</llo_original>
